<compile_context>
chip_gen: v6e
topology: v6e:2x2x1
jax: 0.10.0
libtpu: 0.0.40
codegen_flags: <defaults>
</compile_context>

<pallas_src>
import functools

import jax
import jax.numpy as jnp
from jax.experimental import pallas as pl
from jax.experimental.pallas import tpu as pltpu


def _basic_block_kernel(x_ref, w1_ref, b1_ref, w2_ref, b2_ref, out_ref,
                        pad_ref, cols_ref, *, H, W, C, LPAD):
    """Fused BasicBlock forward for one image in CHW (lanes = flattened H*W)."""
    HW = H * W
    dt = x_ref.dtype
    x0 = x_ref[0]                                            # (C, HW) lane-dense

    # Edge-column lane masks: lanes where a kx=-1 / kx=+1 tap would wrap rows.
    wcol = jax.lax.broadcasted_iota(jnp.int32, (1, HW), 1) % W
    not_left = wcol != 0                                     # valid for dx = -1
    not_right = wcol != (W - 1)                              # valid for dx = +1

    def conv3x3(w_ref):
        # pad_ref: (C, LPAD + HW + LPAD) flat row buffer, all zero except the
        # interior [LPAD, LPAD+HW) which holds the current activation.
        # Tap (ky, kx) is the static window at offset LPAD + (ky-1)*W + (kx-1):
        # row under/overflow lands in the zero borders; the only wrong reads
        # (column wrap) are zeroed by the two lane masks above.
        for ky in range(3):
            for kx in range(3):
                tap = ky * 3 + kx
                start = LPAD + (ky - 1) * W + (kx - 1)
                vals = pad_ref[:, start:start + HW]          # (C, HW)
                if kx == 0:
                    vals = jnp.where(not_left, vals, jnp.zeros_like(vals))
                elif kx == 2:
                    vals = jnp.where(not_right, vals, jnp.zeros_like(vals))
                cols_ref[tap * C:(tap + 1) * C, :] = vals
        # One deep-K MXU matmul; N (lane) dim = HW -> full column utilisation.
        return jnp.dot(w_ref[...], cols_ref[...],
                       preferred_element_type=jnp.float32)   # (Cout, HW) f32

    # Stage 1: conv1 (BN1 scale pre-folded into w1) -> +bias -> ReLU.
    pad_ref[...] = jnp.zeros_like(pad_ref)                   # zero borders
    pad_ref[:, LPAD:LPAD + HW] = x0                          # 128-aligned store
    y1 = jnp.maximum(conv3x3(w1_ref) + b1_ref[...], 0.0)     # (C, HW) f32

    # Stage 2: conv2 (BN2 scale pre-folded) -> +bias -> +residual -> ReLU.
    # Intermediate never leaves VMEM; borders are still zero from the memset.
    pad_ref[:, LPAD:LPAD + HW] = y1.astype(dt)
    y2 = conv3x3(w2_ref) + b2_ref[...] + x0.astype(jnp.float32)
    out_ref[0] = jnp.maximum(y2, 0.0).astype(out_ref.dtype)


def basic_block(x_nchw, params):
    """ResNet BasicBlock (stride=1, downsample=None); NCHW in / NCHW out."""
    eps = 1e-5
    w1, g1, b1, m1, v1, w2, g2, b2, m2, v2 = params          # convs in HWIO
    N, C, H, W = x_nchw.shape
    Cout = w1.shape[-1]
    assert C == Cout, "stride=1 / no-downsample BasicBlock requires Cin == Cout"
    HW = H * W
    LPAD = ((W + 1 + 127) // 128) * 128                      # 128-aligned border

    # TODO(synk): BatchNorm is eval-mode (running stats) folded into the conv
    # weights + a per-channel bias; training-mode batch statistics are not
    # computed in-kernel.
    s1 = g1 / jnp.sqrt(v1 + eps)
    s2 = g2 / jnp.sqrt(v2 + eps)
    o1 = (b1 - m1 * s1).astype(jnp.float32).reshape(Cout, 1)
    o2 = (b2 - m2 * s2).astype(jnp.float32).reshape(Cout, 1)

    # HWIO (3,3,Cin,Cout) -> (9Cin, Cout) row-major over (ky,kx,ci) ->
    # transpose to (Cout, 9Cin) for the y^T = W @ cols orientation, with the
    # BN scale folded into each output-channel row.  Kept in the activation
    # dtype so bf16 runs would feed the MXU natively (f32 accumulation).
    w1m = (jnp.transpose(w1.reshape(9 * C, Cout)) * s1[:, None]).astype(x_nchw.dtype)
    w2m = (jnp.transpose(w2.reshape(9 * C, Cout)) * s2[:, None]).astype(x_nchw.dtype)

    x_flat = x_nchw.reshape(N, C, HW)                        # lane-dense H*W

    kernel = functools.partial(_basic_block_kernel, H=H, W=W, C=C, LPAD=LPAD)
    itemsize = x_nchw.dtype.itemsize
    cost = pl.CostEstimate(
        flops=int(2 * N * 2 * HW * 9 * C * Cout),            # two 3x3 convs
        transcendentals=0,
        bytes_accessed=int((2 * N * C * HW + 2 * Cout * 9 * C) * itemsize),
    )

    out = pl.pallas_call(
        kernel,
        out_shape=jax.ShapeDtypeStruct((N, Cout, HW), x_nchw.dtype),
        grid=(N,),
        in_specs=[
            pl.BlockSpec((1, C, HW), lambda n: (n, 0, 0)),   # x (+ residual)
            pl.BlockSpec((Cout, 9 * C), lambda n: (0, 0)),   # w1 (BN1 folded)
            pl.BlockSpec((Cout, 1), lambda n: (0, 0)),       # bias1
            pl.BlockSpec((Cout, 9 * C), lambda n: (0, 0)),   # w2 (BN2 folded)
            pl.BlockSpec((Cout, 1), lambda n: (0, 0)),       # bias2
        ],
        out_specs=pl.BlockSpec((1, Cout, HW), lambda n: (n, 0, 0)),
        scratch_shapes=[
            pltpu.VMEM((C, LPAD + HW + LPAD), x_nchw.dtype), # padded row buffer
            pltpu.VMEM((9 * C, HW), x_nchw.dtype),           # im2col columns
        ],
        compiler_params=pltpu.CompilerParams(
            dimension_semantics=("parallel",)),
        cost_estimate=cost,
    )(x_flat, w1m, o1, w2m, o2)
    return out.reshape(N, Cout, H, W)


def basic_block_reference(x_nchw, params):
    """Pure-JAX reference (full f32 precision) for correctness checking."""
    eps = 1e-5
    w1, g1, b1, m1, v1, w2, g2, b2, m2, v2 = params

    def conv(x, w):
        return jax.lax.conv_general_dilated(
            x, w, window_strides=(1, 1), padding="SAME",
            dimension_numbers=("NCHW", "HWIO", "NCHW"),
            precision=jax.lax.Precision.HIGHEST)

    def bn(x, g, b, m, v):
        c = x.shape[1]
        rs = lambda t: t.reshape(1, c, 1, 1)
        return (x - rs(m)) / jnp.sqrt(rs(v) + eps) * rs(g) + rs(b)

    o = jnp.maximum(bn(conv(x_nchw, w1), g1, b1, m1, v1), 0.0)
    o = bn(conv(o, w2), g2, b2, m2, v2) + x_nchw
    return jnp.maximum(o, 0.0)


if __name__ == "__main__":
    N, C, H, W = 2, 4, 16, 16          # in_channels == out_channels, stride=1
    key = jax.random.PRNGKey(0)
    keys = jax.random.split(key, 11)

    # PyTorch-native NCHW input (also the kernel's native layout now).
    x_nchw = jax.random.normal(keys[0], (N, C, H, W), jnp.float32)

    # Conv weights: PyTorch OIHW -> HWIO.
    w1_oihw = 0.1 * jax.random.normal(keys[1], (C, C, 3, 3), jnp.float32)
    w2_oihw = 0.1 * jax.random.normal(keys[2], (C, C, 3, 3), jnp.float32)
    w1 = jnp.transpose(w1_oihw, (2, 3, 1, 0))
    w2 = jnp.transpose(w2_oihw, (2, 3, 1, 0))

    # BatchNorm params / running stats (deterministic, non-trivial).
    g1 = 1.0 + 0.1 * jax.random.normal(keys[3], (C,), jnp.float32)
    b1 = 0.1 * jax.random.normal(keys[4], (C,), jnp.float32)
    m1 = 0.1 * jax.random.normal(keys[5], (C,), jnp.float32)
    v1 = 1.0 + 0.1 * jax.random.uniform(keys[6], (C,), jnp.float32)
    g2 = 1.0 + 0.1 * jax.random.normal(keys[7], (C,), jnp.float32)
    b2 = 0.1 * jax.random.normal(keys[8], (C,), jnp.float32)
    m2 = 0.1 * jax.random.normal(keys[9], (C,), jnp.float32)
    v2 = 1.0 + 0.1 * jax.random.uniform(keys[10], (C,), jnp.float32)

    params = (w1, g1, b1, m1, v1, w2, g2, b2, m2, v2)

    out = jax.block_until_ready(basic_block(x_nchw, params))
    ref = basic_block_reference(x_nchw, params)

    assert out.shape == (N, C, H, W)
    # Tolerance allows for reduced-precision MXU passes on f32 operands
    # (the reference is forced to Precision.HIGHEST); typical error is ~1e-6.
    assert jnp.allclose(out, ref, rtol=2e-2, atol=2e-2), (
        f"max abs err = {jnp.max(jnp.abs(out - ref))}")

    print("KERNEL_OK")
</pallas_src>

<mosaic_0001>
module attributes {stable_mosaic.version = 11 : i64} {
  func.func @_basic_block_kernel(%arg0: i32, %arg1: memref<1x4x256xf32, #tpu.memory_space<vmem>>, %arg2: memref<4x36xf32, #tpu.memory_space<vmem>>, %arg3: memref<4x1xf32, #tpu.memory_space<vmem>>, %arg4: memref<4x36xf32, #tpu.memory_space<vmem>>, %arg5: memref<4x1xf32, #tpu.memory_space<vmem>>, %arg6: memref<1x4x256xf32, #tpu.memory_space<vmem>>, %arg7: memref<4x512xf32, #tpu.memory_space<vmem>>, %arg8: memref<36x256xf32, #tpu.memory_space<vmem>>) attributes {dimension_semantics = [#tpu.dimension_semantics<parallel>], iteration_bounds = array<i64: 2>, scalar_prefetch = 0 : i64, scratch_operands = 2 : i64, tpu.core_type = #tpu.core_type<tc>, window_params = [{transform_indices = @transform_0, window_bounds = array<i64: 1, 4, 256>}, {pipeline_mode = #tpu.pipeline_mode<synchronous>, transform_indices = @transform_1, window_bounds = array<i64: 4, 36>}, {pipeline_mode = #tpu.pipeline_mode<synchronous>, transform_indices = @transform_2, window_bounds = array<i64: 4, 1>}, {pipeline_mode = #tpu.pipeline_mode<synchronous>, transform_indices = @transform_3, window_bounds = array<i64: 4, 36>}, {pipeline_mode = #tpu.pipeline_mode<synchronous>, transform_indices = @transform_4, window_bounds = array<i64: 4, 1>}, {transform_indices = @transform_5, window_bounds = array<i64: 1, 4, 256>}]} {
    %c0 = arith.constant 0 : index
    %c0_0 = arith.constant 0 : index
    %c0_1 = arith.constant 0 : index
    %0 = vector.load %arg1[%c0, %c0_0, %c0_1] : memref<1x4x256xf32, #tpu.memory_space<vmem>>, vector<1x4x256xf32>
    %1 = vector.shape_cast %0 : vector<1x4x256xf32> to vector<4x256xf32>
    %2 = tpu.iota {dimensions = array<i32: 1>} : vector<1x256xi32>
    %c16_i32 = arith.constant 16 : i32
    %c0_i32 = arith.constant 0 : i32
    %3 = arith.cmpi eq, %c16_i32, %c0_i32 : i32
    %c1_i32 = arith.constant 1 : i32
    %4 = arith.select %3, %c1_i32, %c16_i32 : i32
    %5 = vector.broadcast %4 : i32 to vector<1x256xi32>
    %6 = arith.remsi %2, %5 : vector<1x256xi32>
    %c0_i32_2 = arith.constant 0 : i32
    %7 = vector.broadcast %c0_i32_2 : i32 to vector<1x256xi32>
    %8 = arith.cmpi ne, %6, %7 : vector<1x256xi32>
    %c0_i32_3 = arith.constant 0 : i32
    %9 = vector.broadcast %c0_i32_3 : i32 to vector<1x256xi32>
    %10 = arith.cmpi slt, %6, %9 : vector<1x256xi32>
    %c0_i32_4 = arith.constant 0 : i32
    %11 = arith.cmpi slt, %4, %c0_i32_4 : i32
    %12 = vector.broadcast %11 : i1 to vector<1x256xi1>
    %13 = vector.broadcast %12 : vector<1x256xi1> to vector<1x256xi1>
    %14 = arith.xori %10, %13 : vector<1x256xi1>
    %15 = arith.andi %14, %8 : vector<1x256xi1>
    %16 = vector.broadcast %4 : i32 to vector<1x256xi32>
    %17 = arith.addi %6, %16 : vector<1x256xi32>
    %18 = arith.select %15, %17, %6 : vector<1x256xi1>, vector<1x256xi32>
    %c0_i32_5 = arith.constant 0 : i32
    %19 = vector.broadcast %c0_i32_5 : i32 to vector<1x256xi32>
    %20 = arith.cmpi ne, %18, %19 : vector<1x256xi32>
    %c15_i32 = arith.constant 15 : i32
    %21 = vector.broadcast %c15_i32 : i32 to vector<1x256xi32>
    %22 = arith.cmpi ne, %18, %21 : vector<1x256xi32>
    %cst = arith.constant 0.000000e+00 : f32
    %23 = vector.broadcast %cst : f32 to vector<4x512xf32>
    %c0_6 = arith.constant 0 : index
    %c0_7 = arith.constant 0 : index
    %24 = vector.load %arg7[%c0_6, %c0_7] : memref<4x512xf32, #tpu.memory_space<vmem>>, vector<4x512xf32>
    tpu.vector_store %arg7[%c0_6, %c0_7], %23 {strides = array<i32>} : memref<4x512xf32, #tpu.memory_space<vmem>>, vector<4x512xf32>,
    %c0_8 = arith.constant 0 : index
    %c128 = arith.constant 128 : index
    %25 = vector.load %arg7[%c0_8, %c128] : memref<4x512xf32, #tpu.memory_space<vmem>>, vector<4x256xf32>
    tpu.vector_store %arg7[%c0_8, %c128], %1 {strides = array<i32>} : memref<4x512xf32, #tpu.memory_space<vmem>>, vector<4x256xf32>,
    %c0_9 = arith.constant 0 : index
    %c111 = arith.constant 111 : index
    %26 = vector.load %arg7[%c0_9, %c111] : memref<4x512xf32, #tpu.memory_space<vmem>>, vector<4x256xf32>
    %cst_10 = arith.constant 0.000000e+00 : f32
    %27 = vector.broadcast %cst_10 : f32 to vector<4x256xf32>
    %28 = vector.shape_cast %20 : vector<1x256xi1> to vector<1x256xi1>
    %29 = vector.broadcast %28 : vector<1x256xi1> to vector<4x256xi1>
    %30 = arith.select %29, %26, %27 : vector<4x256xi1>, vector<4x256xf32>
    %c0_11 = arith.constant 0 : index
    %c0_12 = arith.constant 0 : index
    %31 = vector.load %arg8[%c0_11, %c0_12] : memref<36x256xf32, #tpu.memory_space<vmem>>, vector<4x256xf32>
    tpu.vector_store %arg8[%c0_11, %c0_12], %30 {strides = array<i32>} : memref<36x256xf32, #tpu.memory_space<vmem>>, vector<4x256xf32>,
    %c0_13 = arith.constant 0 : index
    %c112 = arith.constant 112 : index
    %32 = vector.load %arg7[%c0_13, %c112] : memref<4x512xf32, #tpu.memory_space<vmem>>, vector<4x256xf32>
    %c4 = arith.constant 4 : index
    %c0_14 = arith.constant 0 : index
    %33 = vector.load %arg8[%c4, %c0_14] : memref<36x256xf32, #tpu.memory_space<vmem>>, vector<4x256xf32>
    tpu.vector_store %arg8[%c4, %c0_14], %32 {strides = array<i32>} : memref<36x256xf32, #tpu.memory_space<vmem>>, vector<4x256xf32>,
    %c0_15 = arith.constant 0 : index
    %c113 = arith.constant 113 : index
    %34 = vector.load %arg7[%c0_15, %c113] : memref<4x512xf32, #tpu.memory_space<vmem>>, vector<4x256xf32>
    %cst_16 = arith.constant 0.000000e+00 : f32
    %35 = vector.broadcast %cst_16 : f32 to vector<4x256xf32>
    %36 = vector.shape_cast %22 : vector<1x256xi1> to vector<1x256xi1>
    %37 = vector.broadcast %36 : vector<1x256xi1> to vector<4x256xi1>
    %38 = arith.select %37, %34, %35 : vector<4x256xi1>, vector<4x256xf32>
    %c8 = arith.constant 8 : index
    %c0_17 = arith.constant 0 : index
    %39 = vector.load %arg8[%c8, %c0_17] : memref<36x256xf32, #tpu.memory_space<vmem>>, vector<4x256xf32>
    tpu.vector_store %arg8[%c8, %c0_17], %38 {strides = array<i32>} : memref<36x256xf32, #tpu.memory_space<vmem>>, vector<4x256xf32>,
    %c0_18 = arith.constant 0 : index
    %c127 = arith.constant 127 : index
    %40 = vector.load %arg7[%c0_18, %c127] : memref<4x512xf32, #tpu.memory_space<vmem>>, vector<4x256xf32>
    %cst_19 = arith.constant 0.000000e+00 : f32
    %41 = vector.broadcast %cst_19 : f32 to vector<4x256xf32>
    %42 = vector.shape_cast %20 : vector<1x256xi1> to vector<1x256xi1>
    %43 = vector.broadcast %42 : vector<1x256xi1> to vector<4x256xi1>
    %44 = arith.select %43, %40, %41 : vector<4x256xi1>, vector<4x256xf32>
    %c12 = arith.constant 12 : index
    %c0_20 = arith.constant 0 : index
    %45 = vector.load %arg8[%c12, %c0_20] : memref<36x256xf32, #tpu.memory_space<vmem>>, vector<4x256xf32>
    tpu.vector_store %arg8[%c12, %c0_20], %44 {strides = array<i32>} : memref<36x256xf32, #tpu.memory_space<vmem>>, vector<4x256xf32>,
    %c0_21 = arith.constant 0 : index
    %c128_22 = arith.constant 128 : index
    %46 = vector.load %arg7[%c0_21, %c128_22] : memref<4x512xf32, #tpu.memory_space<vmem>>, vector<4x256xf32>
    %c16 = arith.constant 16 : index
    %c0_23 = arith.constant 0 : index
    %47 = vector.load %arg8[%c16, %c0_23] : memref<36x256xf32, #tpu.memory_space<vmem>>, vector<4x256xf32>
    tpu.vector_store %arg8[%c16, %c0_23], %46 {strides = array<i32>} : memref<36x256xf32, #tpu.memory_space<vmem>>, vector<4x256xf32>,
    %c0_24 = arith.constant 0 : index
    %c129 = arith.constant 129 : index
    %48 = vector.load %arg7[%c0_24, %c129] : memref<4x512xf32, #tpu.memory_space<vmem>>, vector<4x256xf32>
    %cst_25 = arith.constant 0.000000e+00 : f32
    %49 = vector.broadcast %cst_25 : f32 to vector<4x256xf32>
    %50 = vector.shape_cast %22 : vector<1x256xi1> to vector<1x256xi1>
    %51 = vector.broadcast %50 : vector<1x256xi1> to vector<4x256xi1>
    %52 = arith.select %51, %48, %49 : vector<4x256xi1>, vector<4x256xf32>
    %c20 = arith.constant 20 : index
    %c0_26 = arith.constant 0 : index
    %53 = vector.load %arg8[%c20, %c0_26] : memref<36x256xf32, #tpu.memory_space<vmem>>, vector<4x256xf32>
    tpu.vector_store %arg8[%c20, %c0_26], %52 {strides = array<i32>} : memref<36x256xf32, #tpu.memory_space<vmem>>, vector<4x256xf32>,
    %c0_27 = arith.constant 0 : index
    %c143 = arith.constant 143 : index
    %54 = vector.load %arg7[%c0_27, %c143] : memref<4x512xf32, #tpu.memory_space<vmem>>, vector<4x256xf32>
    %cst_28 = arith.constant 0.000000e+00 : f32
    %55 = vector.broadcast %cst_28 : f32 to vector<4x256xf32>
    %56 = vector.shape_cast %20 : vector<1x256xi1> to vector<1x256xi1>
    %57 = vector.broadcast %56 : vector<1x256xi1> to vector<4x256xi1>
    %58 = arith.select %57, %54, %55 : vector<4x256xi1>, vector<4x256xf32>
    %c24 = arith.constant 24 : index
    %c0_29 = arith.constant 0 : index
    %59 = vector.load %arg8[%c24, %c0_29] : memref<36x256xf32, #tpu.memory_space<vmem>>, vector<4x256xf32>
    tpu.vector_store %arg8[%c24, %c0_29], %58 {strides = array<i32>} : memref<36x256xf32, #tpu.memory_space<vmem>>, vector<4x256xf32>,
    %c0_30 = arith.constant 0 : index
    %c144 = arith.constant 144 : index
    %60 = vector.load %arg7[%c0_30, %c144] : memref<4x512xf32, #tpu.memory_space<vmem>>, vector<4x256xf32>
    %c28 = arith.constant 28 : index
    %c0_31 = arith.constant 0 : index
    %61 = vector.load %arg8[%c28, %c0_31] : memref<36x256xf32, #tpu.memory_space<vmem>>, vector<4x256xf32>
    tpu.vector_store %arg8[%c28, %c0_31], %60 {strides = array<i32>} : memref<36x256xf32, #tpu.memory_space<vmem>>, vector<4x256xf32>,
    %c0_32 = arith.constant 0 : index
    %c145 = arith.constant 145 : index
    %62 = vector.load %arg7[%c0_32, %c145] : memref<4x512xf32, #tpu.memory_space<vmem>>, vector<4x256xf32>
    %cst_33 = arith.constant 0.000000e+00 : f32
    %63 = vector.broadcast %cst_33 : f32 to vector<4x256xf32>
    %64 = vector.shape_cast %22 : vector<1x256xi1> to vector<1x256xi1>
    %65 = vector.broadcast %64 : vector<1x256xi1> to vector<4x256xi1>
    %66 = arith.select %65, %62, %63 : vector<4x256xi1>, vector<4x256xf32>
    %c32 = arith.constant 32 : index
    %c0_34 = arith.constant 0 : index
    %67 = vector.load %arg8[%c32, %c0_34] : memref<36x256xf32, #tpu.memory_space<vmem>>, vector<4x256xf32>
    tpu.vector_store %arg8[%c32, %c0_34], %66 {strides = array<i32>} : memref<36x256xf32, #tpu.memory_space<vmem>>, vector<4x256xf32>,
    %c0_35 = arith.constant 0 : index
    %c0_36 = arith.constant 0 : index
    %68 = vector.load %arg2[%c0_35, %c0_36] : memref<4x36xf32, #tpu.memory_space<vmem>>, vector<4x36xf32>
    %c0_37 = arith.constant 0 : index
    %c0_38 = arith.constant 0 : index
    %69 = vector.load %arg8[%c0_37, %c0_38] : memref<36x256xf32, #tpu.memory_space<vmem>>, vector<36x256xf32>
    %cst_39 = arith.constant dense<0.000000e+00> : vector<4x256xf32>
    %70 = tpu.matmul %68, %69, %cst_39 {dimension_numbers = #tpu.dot_dimension_numbers<[1], [0], [0], [1], [0, 0, 1, 1], [], []>} : vector<4x36xf32>, vector<36x256xf32>, vector<4x256xf32> -> vector<4x256xf32>
    %c0_40 = arith.constant 0 : index
    %c0_41 = arith.constant 0 : index
    %71 = vector.load %arg3[%c0_40, %c0_41] : memref<4x1xf32, #tpu.memory_space<vmem>>, vector<4x1xf32>
    %72 = vector.broadcast %71 : vector<4x1xf32> to vector<4x256xf32>
    %73 = arith.addf %70, %72 : vector<4x256xf32>
    %cst_42 = arith.constant 0.000000e+00 : f32
    %74 = vector.broadcast %cst_42 : f32 to vector<4x256xf32>
    %75 = arith.maximumf %73, %74 : vector<4x256xf32>
    %c0_43 = arith.constant 0 : index
    %c128_44 = arith.constant 128 : index
    %76 = vector.load %arg7[%c0_43, %c128_44] : memref<4x512xf32, #tpu.memory_space<vmem>>, vector<4x256xf32>
    tpu.vector_store %arg7[%c0_43, %c128_44], %75 {strides = array<i32>} : memref<4x512xf32, #tpu.memory_space<vmem>>, vector<4x256xf32>,
    %c0_45 = arith.constant 0 : index
    %c111_46 = arith.constant 111 : index
    %77 = vector.load %arg7[%c0_45, %c111_46] : memref<4x512xf32, #tpu.memory_space<vmem>>, vector<4x256xf32>
    %cst_47 = arith.constant 0.000000e+00 : f32
    %78 = vector.broadcast %cst_47 : f32 to vector<4x256xf32>
    %79 = vector.shape_cast %20 : vector<1x256xi1> to vector<1x256xi1>
    %80 = vector.broadcast %79 : vector<1x256xi1> to vector<4x256xi1>
    %81 = arith.select %80, %77, %78 : vector<4x256xi1>, vector<4x256xf32>
    %c0_48 = arith.constant 0 : index
    %c0_49 = arith.constant 0 : index
    %82 = vector.load %arg8[%c0_48, %c0_49] : memref<36x256xf32, #tpu.memory_space<vmem>>, vector<4x256xf32>
    tpu.vector_store %arg8[%c0_48, %c0_49], %81 {strides = array<i32>} : memref<36x256xf32, #tpu.memory_space<vmem>>, vector<4x256xf32>,
    %c0_50 = arith.constant 0 : index
    %c112_51 = arith.constant 112 : index
    %83 = vector.load %arg7[%c0_50, %c112_51] : memref<4x512xf32, #tpu.memory_space<vmem>>, vector<4x256xf32>
    %c4_52 = arith.constant 4 : index
    %c0_53 = arith.constant 0 : index
    %84 = vector.load %arg8[%c4_52, %c0_53] : memref<36x256xf32, #tpu.memory_space<vmem>>, vector<4x256xf32>
    tpu.vector_store %arg8[%c4_52, %c0_53], %83 {strides = array<i32>} : memref<36x256xf32, #tpu.memory_space<vmem>>, vector<4x256xf32>,
    %c0_54 = arith.constant 0 : index
    %c113_55 = arith.constant 113 : index
    %85 = vector.load %arg7[%c0_54, %c113_55] : memref<4x512xf32, #tpu.memory_space<vmem>>, vector<4x256xf32>
    %cst_56 = arith.constant 0.000000e+00 : f32
    %86 = vector.broadcast %cst_56 : f32 to vector<4x256xf32>
    %87 = vector.shape_cast %22 : vector<1x256xi1> to vector<1x256xi1>
    %88 = vector.broadcast %87 : vector<1x256xi1> to vector<4x256xi1>
    %89 = arith.select %88, %85, %86 : vector<4x256xi1>, vector<4x256xf32>
    %c8_57 = arith.constant 8 : index
    %c0_58 = arith.constant 0 : index
    %90 = vector.load %arg8[%c8_57, %c0_58] : memref<36x256xf32, #tpu.memory_space<vmem>>, vector<4x256xf32>
    tpu.vector_store %arg8[%c8_57, %c0_58], %89 {strides = array<i32>} : memref<36x256xf32, #tpu.memory_space<vmem>>, vector<4x256xf32>,
    %c0_59 = arith.constant 0 : index
    %c127_60 = arith.constant 127 : index
    %91 = vector.load %arg7[%c0_59, %c127_60] : memref<4x512xf32, #tpu.memory_space<vmem>>, vector<4x256xf32>
    %cst_61 = arith.constant 0.000000e+00 : f32
    %92 = vector.broadcast %cst_61 : f32 to vector<4x256xf32>
    %93 = vector.shape_cast %20 : vector<1x256xi1> to vector<1x256xi1>
    %94 = vector.broadcast %93 : vector<1x256xi1> to vector<4x256xi1>
    %95 = arith.select %94, %91, %92 : vector<4x256xi1>, vector<4x256xf32>
    %c12_62 = arith.constant 12 : index
    %c0_63 = arith.constant 0 : index
    %96 = vector.load %arg8[%c12_62, %c0_63] : memref<36x256xf32, #tpu.memory_space<vmem>>, vector<4x256xf32>
    tpu.vector_store %arg8[%c12_62, %c0_63], %95 {strides = array<i32>} : memref<36x256xf32, #tpu.memory_space<vmem>>, vector<4x256xf32>,
    %c0_64 = arith.constant 0 : index
    %c128_65 = arith.constant 128 : index
    %97 = vector.load %arg7[%c0_64, %c128_65] : memref<4x512xf32, #tpu.memory_space<vmem>>, vector<4x256xf32>
    %c16_66 = arith.constant 16 : index
    %c0_67 = arith.constant 0 : index
    %98 = vector.load %arg8[%c16_66, %c0_67] : memref<36x256xf32, #tpu.memory_space<vmem>>, vector<4x256xf32>
    tpu.vector_store %arg8[%c16_66, %c0_67], %97 {strides = array<i32>} : memref<36x256xf32, #tpu.memory_space<vmem>>, vector<4x256xf32>,
    %c0_68 = arith.constant 0 : index
    %c129_69 = arith.constant 129 : index
    %99 = vector.load %arg7[%c0_68, %c129_69] : memref<4x512xf32, #tpu.memory_space<vmem>>, vector<4x256xf32>
    %cst_70 = arith.constant 0.000000e+00 : f32
    %100 = vector.broadcast %cst_70 : f32 to vector<4x256xf32>
    %101 = vector.shape_cast %22 : vector<1x256xi1> to vector<1x256xi1>
    %102 = vector.broadcast %101 : vector<1x256xi1> to vector<4x256xi1>
    %103 = arith.select %102, %99, %100 : vector<4x256xi1>, vector<4x256xf32>
    %c20_71 = arith.constant 20 : index
    %c0_72 = arith.constant 0 : index
    %104 = vector.load %arg8[%c20_71, %c0_72] : memref<36x256xf32, #tpu.memory_space<vmem>>, vector<4x256xf32>
    tpu.vector_store %arg8[%c20_71, %c0_72], %103 {strides = array<i32>} : memref<36x256xf32, #tpu.memory_space<vmem>>, vector<4x256xf32>,
    %c0_73 = arith.constant 0 : index
    %c143_74 = arith.constant 143 : index
    %105 = vector.load %arg7[%c0_73, %c143_74] : memref<4x512xf32, #tpu.memory_space<vmem>>, vector<4x256xf32>
    %cst_75 = arith.constant 0.000000e+00 : f32
    %106 = vector.broadcast %cst_75 : f32 to vector<4x256xf32>
    %107 = vector.shape_cast %20 : vector<1x256xi1> to vector<1x256xi1>
    %108 = vector.broadcast %107 : vector<1x256xi1> to vector<4x256xi1>
    %109 = arith.select %108, %105, %106 : vector<4x256xi1>, vector<4x256xf32>
    %c24_76 = arith.constant 24 : index
    %c0_77 = arith.constant 0 : index
    %110 = vector.load %arg8[%c24_76, %c0_77] : memref<36x256xf32, #tpu.memory_space<vmem>>, vector<4x256xf32>
    tpu.vector_store %arg8[%c24_76, %c0_77], %109 {strides = array<i32>} : memref<36x256xf32, #tpu.memory_space<vmem>>, vector<4x256xf32>,
    %c0_78 = arith.constant 0 : index
    %c144_79 = arith.constant 144 : index
    %111 = vector.load %arg7[%c0_78, %c144_79] : memref<4x512xf32, #tpu.memory_space<vmem>>, vector<4x256xf32>
    %c28_80 = arith.constant 28 : index
    %c0_81 = arith.constant 0 : index
    %112 = vector.load %arg8[%c28_80, %c0_81] : memref<36x256xf32, #tpu.memory_space<vmem>>, vector<4x256xf32>
    tpu.vector_store %arg8[%c28_80, %c0_81], %111 {strides = array<i32>} : memref<36x256xf32, #tpu.memory_space<vmem>>, vector<4x256xf32>,
    %c0_82 = arith.constant 0 : index
    %c145_83 = arith.constant 145 : index
    %113 = vector.load %arg7[%c0_82, %c145_83] : memref<4x512xf32, #tpu.memory_space<vmem>>, vector<4x256xf32>
    %cst_84 = arith.constant 0.000000e+00 : f32
    %114 = vector.broadcast %cst_84 : f32 to vector<4x256xf32>
    %115 = vector.shape_cast %22 : vector<1x256xi1> to vector<1x256xi1>
    %116 = vector.broadcast %115 : vector<1x256xi1> to vector<4x256xi1>
    %117 = arith.select %116, %113, %114 : vector<4x256xi1>, vector<4x256xf32>
    %c32_85 = arith.constant 32 : index
    %c0_86 = arith.constant 0 : index
    %118 = vector.load %arg8[%c32_85, %c0_86] : memref<36x256xf32, #tpu.memory_space<vmem>>, vector<4x256xf32>
    tpu.vector_store %arg8[%c32_85, %c0_86], %117 {strides = array<i32>} : memref<36x256xf32, #tpu.memory_space<vmem>>, vector<4x256xf32>,
    %c0_87 = arith.constant 0 : index
    %c0_88 = arith.constant 0 : index
    %119 = vector.load %arg4[%c0_87, %c0_88] : memref<4x36xf32, #tpu.memory_space<vmem>>, vector<4x36xf32>
    %c0_89 = arith.constant 0 : index
    %c0_90 = arith.constant 0 : index
    %120 = vector.load %arg8[%c0_89, %c0_90] : memref<36x256xf32, #tpu.memory_space<vmem>>, vector<36x256xf32>
    %cst_91 = arith.constant dense<0.000000e+00> : vector<4x256xf32>
    %121 = tpu.matmul %119, %120, %cst_91 {dimension_numbers = #tpu.dot_dimension_numbers<[1], [0], [0], [1], [0, 0, 1, 1], [], []>} : vector<4x36xf32>, vector<36x256xf32>, vector<4x256xf32> -> vector<4x256xf32>
    %c0_92 = arith.constant 0 : index
    %c0_93 = arith.constant 0 : index
    %122 = vector.load %arg5[%c0_92, %c0_93] : memref<4x1xf32, #tpu.memory_space<vmem>>, vector<4x1xf32>
    %123 = vector.broadcast %122 : vector<4x1xf32> to vector<4x256xf32>
    %124 = arith.addf %121, %123 : vector<4x256xf32>
    %125 = arith.addf %124, %1 : vector<4x256xf32>
    %cst_94 = arith.constant 0.000000e+00 : f32
    %126 = vector.broadcast %cst_94 : f32 to vector<4x256xf32>
    %127 = arith.maximumf %125, %126 : vector<4x256xf32>
    %c0_95 = arith.constant 0 : index
    %c0_96 = arith.constant 0 : index
    %c0_97 = arith.constant 0 : index
    %128 = vector.load %arg6[%c0_95, %c0_96, %c0_97] : memref<1x4x256xf32, #tpu.memory_space<vmem>>, vector<1x4x256xf32>
    %129 = vector.shape_cast %128 : vector<1x4x256xf32> to vector<4x256xf32>
    %130 = vector.shape_cast %127 : vector<4x256xf32> to vector<1x4x256xf32>
    tpu.vector_store %arg6[%c0_95, %c0_96, %c0_97], %130 {strides = array<i32>} : memref<1x4x256xf32, #tpu.memory_space<vmem>>, vector<1x4x256xf32>,
    return
  }
  func.func @transform_0(%arg0: i32) -> (i32, i32, i32) {
    %c0_i32 = arith.constant 0 : i32
    %c0_i32_0 = arith.constant 0 : i32
    %c0_i32_1 = arith.constant 0 : i32
    return %arg0, %c0_i32, %c0_i32_0 : i32, i32, i32
  }
  func.func @transform_1(%arg0: i32) -> (i32, i32) {
    %c0_i32 = arith.constant 0 : i32
    %c0_i32_0 = arith.constant 0 : i32
    %c0_i32_1 = arith.constant 0 : i32
    return %c0_i32, %c0_i32_0 : i32, i32
  }
  func.func @transform_2(%arg0: i32) -> (i32, i32) {
    %c0_i32 = arith.constant 0 : i32
    %c0_i32_0 = arith.constant 0 : i32
    %c0_i32_1 = arith.constant 0 : i32
    return %c0_i32, %c0_i32_0 : i32, i32
  }
  func.func @transform_3(%arg0: i32) -> (i32, i32) {
    %c0_i32 = arith.constant 0 : i32
    %c0_i32_0 = arith.constant 0 : i32
    %c0_i32_1 = arith.constant 0 : i32
    return %c0_i32, %c0_i32_0 : i32, i32
  }
  func.func @transform_4(%arg0: i32) -> (i32, i32) {
    %c0_i32 = arith.constant 0 : i32
    %c0_i32_0 = arith.constant 0 : i32
    %c0_i32_1 = arith.constant 0 : i32
    return %c0_i32, %c0_i32_0 : i32, i32
  }
  func.func @transform_5(%arg0: i32) -> (i32, i32, i32) {
    %c0_i32 = arith.constant 0 : i32
    %c0_i32_0 = arith.constant 0 : i32
    %c0_i32_1 = arith.constant 0 : i32
    return %arg0, %c0_i32, %c0_i32_0 : i32, i32, i32
  }
}

</mosaic_0001>

<llo_original>
// kernel: tpu_custom_call.1
$region0: #{tpu_custom_call.1}
  #allocation0 [shape = 'u32[]', space=smem, size = 0x4, offset = 0x4, fixed_abs, tag = 'smem constant byte address 0x4 - core index']
  #allocation1 [shape = 'u32[144,128]{1,0:T(1,128)}', space=vmem, size = 0x12000, scoped, tag = 'internal scratch']
  #allocation2 [shape = 'f32[4,512]{1,0:T(4,128)}', space=vmem, size = 0x2000, scoped, tag = 'scratch operand']
  #allocation3 [shape = 'f32[36,256]{1,0:T(8,128)}', space=vmem, size = 0xa000, scoped, tag = 'scratch operand']
  %s0 = inlined_call_operand.hbm [shape: f32[2,4,256], index: 0, kind: input, shape index: {}]
  %s1 = inlined_call_operand.vmem [shape: f32[4,36], index: 1, kind: input, shape index: {}]
  %s2 = inlined_call_operand.vmem [shape: f32[4,1], index: 2, kind: input, shape index: {}]
  %s3 = inlined_call_operand.vmem [shape: f32[4,36], index: 3, kind: input, shape index: {}]
  %s4 = inlined_call_operand.vmem [shape: f32[4,1], index: 4, kind: input, shape index: {}]
  %s5 = inlined_call_operand.hbm [shape: f32[2,4,256], index: 5, kind: output, shape index: {}]
  %s6 = sld [smem:[#allocation0]]
  $region57: #{tpu_custom_call.1} parent=0
    _
  %s8 = ssub.s32 1, %s6
  %s9 = scalar_select 0, %s8, %s6
  $region1: #{tpu_custom_call.1} parent=0
    #allocation4 [shape = 'u8[8192]{0}', space=vmem, size = 0x2000, scoped, tag = 'input window, operand 0']
    #allocation5 [shape = 's32[2]{0}', space=sflag, size = 0x8, scoped, tag = 'scoped memory for tpu_custom_call.1']
    #allocation6 [shape = 's32[2]{0}', space=sflag, size = 0x8, scoped, tag = 'scoped memory for tpu_custom_call.1']
    #allocation7 [shape = 'u8[8192]{0}', space=vmem, size = 0x2000, scoped, tag = 'output window, operand 0']
    %10 = vsyncpa [#allocation5], 0
    %s11 = scalar_lea.sflag [#allocation5], 1
    %12 = vsyncpa %s11, 0
    %13 = vsyncpa [#allocation6], 0
    %s14 = scalar_lea.sflag [#allocation6], 1
    %15 = vsyncpa %s14, 0
    loop: start=0, step=1, limit=4
    $region2: #{tpu_custom_call.1} parent=1 // loop_pre_header
      _
    $region3: #{tpu_custom_call.1} parent=1 // loop_header
      %s17 = sphi 0, %s21
      %p18 = scmp.ge.s32.totalorder %s17, 4
      %s27 = sphi 0, %s29
      %s30 = sphi 0, %s27
      %s31 = sphi 0, %s30
      %s47 = sphi 0, %s31
      %s51 = sphi 0, %s51
      %s53 = sphi 0, %s51
      %s54 = sphi 0, %s53
      %s68 = sphi 0, %s54
      %s72 = sphi 0, %s72
      %s74 = sphi 0, %s72
      %s75 = sphi 0, %s74
      %s89 = sphi 0, %s75
      %s93 = sphi 0, %s93
      %s95 = sphi 0, %s93
      %s96 = sphi 0, %s95
      %s110 = sphi 0, %s96
      %s114 = sphi 0, %s114
      %s116 = sphi 0, %s114
      %s117 = sphi 0, %s116
      %s131 = sphi 0, %s117
      %s137 = sphi 0, %s139
      %s140 = sphi 0, %s137
      %s141 = sphi 0, %s140
      %s157 = sphi 0, %s141
    $region4: #{tpu_custom_call.1} parent=1 // loop_header_branch
      %20 = sbr.rel (%p18) target = $region8
    $region5: #{tpu_custom_call.1} parent=1 // loop_body
      %s22 = ssub.s32 %s17, 1
      %s23 = ssub.s32 %s17, 2
      %s24 = sadd.s32 %s17, 1
      %s25 = ssub.s32 %s17, %s24
      %p26 = scmp.eq.s32.totalorder %s25, 0
      %s28 = sadd.s32 %s27, 1
      %s29 = scalar_select %p26, %s27, %s28
      %p32 = pneg %p26
      %p33 = scmp.eq.s32.totalorder %s17, 1
      %p34 = por %p32, %p33
      %p35 = scmp.ne.s32.totalorder %s27, %s30
      %p36 = scmp.eq.s32.totalorder %s17, 0
      %p37 = por %p35, %p36
      %p38 = scmp.ne.s32.totalorder %s27, %s30
      %p39 = scmp.eq.s32.totalorder %s22, 1
      %p40 = por %p38, %p39
      %p41 = scmp.ne.s32.totalorder %s30, %s31
      %p42 = scmp.eq.s32.totalorder %s22, 0
      %p43 = por %p41, %p42
      %p44 = scmp.ne.s32.totalorder %s30, %s31
      %p45 = scmp.eq.s32.totalorder %s23, 1
      %p46 = por %p44, %p45
      %p48 = scmp.ne.s32.totalorder %s31, %s47
      %p49 = scmp.eq.s32.totalorder %s23, 0
      %p50 = por %p48, %p49
      %s52 = sadd.s32 %s51, 1
      %p55 = scmp.eq.s32.totalorder %s17, 1
      %p56 = scmp.ne.s32.totalorder %s51, %s53
      %p57 = scmp.eq.s32.totalorder %s17, 0
      %p58 = por %p56, %p57
      %p59 = scmp.ne.s32.totalorder %s51, %s53
      %p60 = scmp.eq.s32.totalorder %s22, 1
      %p61 = por %p59, %p60
      %p62 = scmp.ne.s32.totalorder %s53, %s54
      %p63 = scmp.eq.s32.totalorder %s22, 0
      %p64 = por %p62, %p63
      %p65 = scmp.ne.s32.totalorder %s53, %s54
      %p66 = scmp.eq.s32.totalorder %s23, 1
      %p67 = por %p65, %p66
      %p69 = scmp.ne.s32.totalorder %s54, %s68
      %p70 = scmp.eq.s32.totalorder %s23, 0
      %p71 = por %p69, %p70
      %s73 = sadd.s32 %s72, 1
      %p76 = scmp.eq.s32.totalorder %s17, 1
      %p77 = scmp.ne.s32.totalorder %s72, %s74
      %p78 = scmp.eq.s32.totalorder %s17, 0
      %p79 = por %p77, %p78
      %p80 = scmp.ne.s32.totalorder %s72, %s74
      %p81 = scmp.eq.s32.totalorder %s22, 1
      %p82 = por %p80, %p81
      %p83 = scmp.ne.s32.totalorder %s74, %s75
      %p84 = scmp.eq.s32.totalorder %s22, 0
      %p85 = por %p83, %p84
      %p86 = scmp.ne.s32.totalorder %s74, %s75
      %p87 = scmp.eq.s32.totalorder %s23, 1
      %p88 = por %p86, %p87
      %p90 = scmp.ne.s32.totalorder %s75, %s89
      %p91 = scmp.eq.s32.totalorder %s23, 0
      %p92 = por %p90, %p91
      %s94 = sadd.s32 %s93, 1
      %p97 = scmp.eq.s32.totalorder %s17, 1
      %p98 = scmp.ne.s32.totalorder %s93, %s95
      %p99 = scmp.eq.s32.totalorder %s17, 0
      %p100 = por %p98, %p99
      %p101 = scmp.ne.s32.totalorder %s93, %s95
      %p102 = scmp.eq.s32.totalorder %s22, 1
      %p103 = por %p101, %p102
      %p104 = scmp.ne.s32.totalorder %s95, %s96
      %p105 = scmp.eq.s32.totalorder %s22, 0
      %p106 = por %p104, %p105
      %p107 = scmp.ne.s32.totalorder %s95, %s96
      %p108 = scmp.eq.s32.totalorder %s23, 1
      %p109 = por %p107, %p108
      %p111 = scmp.ne.s32.totalorder %s96, %s110
      %p112 = scmp.eq.s32.totalorder %s23, 0
      %p113 = por %p111, %p112
      %s115 = sadd.s32 %s114, 1
      %p118 = scmp.eq.s32.totalorder %s17, 1
      %p119 = scmp.ne.s32.totalorder %s114, %s116
      %p120 = scmp.eq.s32.totalorder %s17, 0
      %p121 = por %p119, %p120
      %p122 = scmp.ne.s32.totalorder %s114, %s116
      %p123 = scmp.eq.s32.totalorder %s22, 1
      %p124 = por %p122, %p123
      %p125 = scmp.ne.s32.totalorder %s116, %s117
      %p126 = scmp.eq.s32.totalorder %s22, 0
      %p127 = por %p125, %p126
      %p128 = scmp.ne.s32.totalorder %s116, %s117
      %p129 = scmp.eq.s32.totalorder %s23, 1
      %p130 = por %p128, %p129
      %p132 = scmp.ne.s32.totalorder %s117, %s131
      %p133 = scmp.eq.s32.totalorder %s23, 0
      %p134 = por %p132, %p133
      %s135 = ssub.s32 %s17, %s24
      %p136 = scmp.eq.s32.totalorder %s135, 0
      %s138 = sadd.s32 %s137, 1
      %s139 = scalar_select %p136, %s137, %s138
      %p142 = pneg %p136
      %p143 = scmp.eq.s32.totalorder %s17, 1
      %p144 = por %p142, %p143
      %p145 = scmp.ne.s32.totalorder %s137, %s140
      %p146 = scmp.eq.s32.totalorder %s17, 0
      %p147 = por %p145, %p146
      %p148 = scmp.ne.s32.totalorder %s137, %s140
      %p149 = scmp.eq.s32.totalorder %s22, 1
      %p150 = por %p148, %p149
      %p151 = scmp.ne.s32.totalorder %s140, %s141
      %p152 = scmp.eq.s32.totalorder %s22, 0
      %p153 = por %p151, %p152
      %p154 = scmp.ne.s32.totalorder %s140, %s141
      %p155 = scmp.eq.s32.totalorder %s23, 1
      %p156 = por %p154, %p155
      %p158 = scmp.ne.s32.totalorder %s141, %s157
      %p159 = scmp.eq.s32.totalorder %s23, 0
      %p160 = por %p158, %p159
      %p161 = scmp.le.s32.totalorder 1, %s17
      %p162 = scmp.lt.s32.totalorder %s17, 3
      %p163 = pnand %p161, %p162
      %p164 = pneg %p163
      // Predicated region
      $region9: #{tpu_custom_call.1} parent=5 // pred_check
        _
      $region10: #{tpu_custom_call.1} parent=5 // pred_check_branch
        %166 = sbr.rel (%p163) target = $region12
      $region11: #{tpu_custom_call.1} parent=5 // pred_region
        %s167 = ssub.s32 %s17, 1
        // Predicated region
        $region13: #{tpu_custom_call.1} parent=11 // pred_check
          %p168 = pneg %p64
        $region14: #{tpu_custom_call.1} parent=11 // pred_check_branch
          %170 = sbr.rel (%p168) target = $region16
        $region15: #{tpu_custom_call.1} parent=11 // pred_region
          _
        $region16: #{tpu_custom_call.1} parent=11 // pred_fallthru
          _
        // Predicated region
        $region17: #{tpu_custom_call.1} parent=11 // pred_check
          %p171 = pneg %p85
        $region18: #{tpu_custom_call.1} parent=11 // pred_check_branch
          %173 = sbr.rel (%p171) target = $region20
        $region19: #{tpu_custom_call.1} parent=11 // pred_region
          _
        $region20: #{tpu_custom_call.1} parent=11 // pred_fallthru
          _
        // Predicated region
        $region21: #{tpu_custom_call.1} parent=11 // pred_check
          %p174 = pneg %p106
        $region22: #{tpu_custom_call.1} parent=11 // pred_check_branch
          %176 = sbr.rel (%p174) target = $region24
        $region23: #{tpu_custom_call.1} parent=11 // pred_region
          _
        $region24: #{tpu_custom_call.1} parent=11 // pred_fallthru
          _
        // Predicated region
        $region25: #{tpu_custom_call.1} parent=11 // pred_check
          %p177 = pneg %p127
        $region26: #{tpu_custom_call.1} parent=11 // pred_check_branch
          %179 = sbr.rel (%p177) target = $region28
        $region27: #{tpu_custom_call.1} parent=11 // pred_region
          _
        $region28: #{tpu_custom_call.1} parent=11 // pred_fallthru
          _
      $region12: #{tpu_custom_call.1} parent=5 // pred_fallthru
        _
      %p180 = scmp.lt.s32.totalorder %s17, 2
      // Predicated region
      $region29: #{tpu_custom_call.1} parent=5 // pred_check
        %p181 = pneg %p180
      $region30: #{tpu_custom_call.1} parent=5 // pred_check_branch
        %183 = sbr.rel (%p181) target = $region32
      $region31: #{tpu_custom_call.1} parent=5 // pred_region
        // Predicated region
        $region33: #{tpu_custom_call.1} parent=31 // pred_check
          %p184 = pneg %p37
        $region34: #{tpu_custom_call.1} parent=31 // pred_check_branch
          %186 = sbr.rel (%p184) target = $region36
        $region35: #{tpu_custom_call.1} parent=31 // pred_region
          %s187 = sand.u32 %s27, 1
          %s188 = scalar_lea.sflag [#allocation5], %s187
          %s189 = sand.u32 %s27, 1
          %s190 = smul.addr %s189, 8
          %s191 = scalar_lea.vmem [#allocation4], %s190
          %s193 = ssub.s32 128, 128
          %194 = vsyncadd %s188, %s193
          %s195 = smul.addr %s17, 2
          %s196 = smul.addr %s195, 64
          %s197 = scalar_lea.hbm %s0, %s196
          %s199 = sshll.u32 %s191, 4
          %s200 = int_to_ptr.vmem [resolvable:$true] %s199
          %202 = dma.hbm_to_vmem [thread:$0]  %s197, 128, %s200, %s188
        $region36: #{tpu_custom_call.1} parent=31 // pred_fallthru
          _
      $region32: #{tpu_custom_call.1} parent=5 // pred_fallthru
        _
      %p203 = scmp.le.s32.totalorder 1, %s17
      %p204 = scmp.lt.s32.totalorder %s17, 3
      %p205 = pnand %p203, %p204
      %p206 = pneg %p205
      // Predicated region
      $region37: #{tpu_custom_call.1} parent=5 // pred_check
        _
      $region38: #{tpu_custom_call.1} parent=5 // pred_check_branch
        %208 = sbr.rel (%p205) target = $region40
      $region39: #{tpu_custom_call.1} parent=5 // pred_region
        %s209 = ssub.s32 %s17, 1
        %s210 = sand.u32 %s30, 1
        %s211 = scalar_lea.sflag [#allocation5], %s210
        %s212 = sand.u32 %s30, 1
        %s213 = smul.addr %s212, 8
        %s214 = scalar_lea.vmem [#allocation4], %s213
        // Predicated region
        $region41: #{tpu_custom_call.1} parent=39 // pred_check
          %p215 = pneg %p43
        $region42: #{tpu_custom_call.1} parent=39 // pred_check_branch
          %217 = sbr.rel (%p215) target = $region44
        $region43: #{tpu_custom_call.1} parent=39 // pred_region
          %218 = dma.done %s211, 128
        $region44: #{tpu_custom_call.1} parent=39 // pred_fallthru
          _
        %s219 = sand.u32 %s30, 1
        %s220 = scalar_lea.sflag [#allocation5], %s219
        %s221 = sand.u32 %s30, 1
        %s222 = smul.addr %s221, 8
        %s223 = scalar_lea.vmem [#allocation4], %s222
        %p224 = pneg %p43
        %p225 = pneg %p40
        %p226 = pneg %p64
        %p227 = pneg %p61
        %p228 = pneg %p85
        %p229 = pneg %p82
        %p230 = pneg %p106
        %p231 = pneg %p103
        %p232 = pneg %p127
        %p233 = pneg %p124
        %p234 = pneg %p153
        %p235 = pneg %p150
        %s236 = sand.u32 %s140, 1
        %s237 = scalar_lea.sflag [#allocation6], %s236
        %s238 = sand.u32 %s140, 1
        %s239 = smul.addr %s238, 8
        %s240 = scalar_lea.vmem [#allocation7], %s239
        %v241 = vld [vmem:[%s214] sm:$0xff]
        %v242 = vlaneseq
        %v243 = vand.u32 %v242, 127
        %v244 = vadd.s32 %v243, 128
        %vm245 = vcmp.lt.s32.totalorder %v243, 0
        %v246 = vsub.s32 0, %v243
        %v247 = vsel %vm245, %v246, %v243
        %v248 = vshrl.u32 %v247, 4
        %v249 = vand.u32 %v247, 15
        %v250 = vsub.s32 0, %v249
        %v251 = vsel %vm245, %v250, %v249
        %vm252 = vcmp.lt.s32.totalorder %v244, 0
        %v253 = vsub.s32 0, %v244
        %v254 = vsel %vm252, %v253, %v244
        %v255 = vshrl.u32 %v254, 4
        %v256 = vand.u32 %v254, 15
        %v257 = vsub.s32 0, %v256
        %v258 = vsel %vm252, %v257, %v256
        %vm259 = vcmp.ne.s32.totalorder %v251, 0
        %vm260 = vcmp.ne.s32.totalorder %v258, 0
        %vm261 = vcmp.lt.s32.totalorder %v251, 0
        %vm262 = vcmp.lt.s32.totalorder %v258, 0
        %vm263 = vmand %vm261, %vm259
        %vm264 = vmand %vm262, %vm260
        %v265 = vadd.s32 %v251, 16
        %v266 = vadd.s32 %v258, 16
        %v267 = vsel %vm263, %v265, %v251
        %v268 = vsel %vm264, %v266, %v258
        %vm269 = vcmp.ne.s32.totalorder %v267, 0
        %vm270 = vcmp.ne.s32.totalorder %v268, 0
        %vm271 = vcmp.ne.s32.totalorder %v267, 15
        %vm272 = vcmp.ne.s32.totalorder %v268, 15
        %273 = vst [vmem:[#allocation2] sm:$0xff] 0.0
        %274 = vst [vmem:[#allocation2 + $0x8] sm:$0xff] 0.0
        %275 = vst [vmem:[#allocation2 + $0x4] sm:$0xff] %v241
        %v276 = vld [vmem:[#allocation2] sm:$0xff]
        %v277 = vld [vmem:[#allocation2 + $0x8] sm:$0xf]
        %v278 = vsel %vm269, 1, 0
        %v279 = vsel %vm270, 1, 0
        %vm280 = vcmp.eq.s32.totalorder %v278, 1
        %vm281 = vcmp.eq.s32.totalorder %v279, 1
        %v284 = vcombine.high %v276, %v276
        %285 = vrot.lane.b32.xlu0 %v276, 17
        %v286 = vpop.permute.xlu0 %285
        %287 = vrot.lane.b32.xlu0 %v284, 17
        %v288 = vpop.permute.xlu0 %287
        %289 = vrot.lane.b32.xlu0 %v277, 17
        %v290 = vpop.permute.xlu0 %289
        %vm291 = vcmask 138240
        %v292 = vsel %vm291, %v286, %v288
        %v293 = vsel %vm291, %v288, %v290
        %v296 = vsel %vm280, %v292, 0.0
        %v297 = vsel %vm281, %v293, 0.0
        %298 = vst [vmem:[#allocation3] sm:$0xf] %v296
        %299 = vst [vmem:[#allocation3 + $0x8] sm:$0xf] %v297
        %v300 = vld [vmem:[#allocation2] sm:$0xff]
        %v301 = vld [vmem:[#allocation2 + $0x8] sm:$0xf]
        %v304 = vcombine.low %v300, %v300
        %v305 = vcombine.low %v301, %v301
        %306 = vrot.lane.b32.xlu0 %v304, 16
        %v307 = vpop.permute.xlu0 %306
        %308 = vrot.lane.b32.xlu0 %v300, 16
        %v309 = vpop.permute.xlu0 %308
        %310 = vrot.lane.b32.xlu0 %v305, 16
        %v311 = vpop.permute.xlu0 %310
        %vm312 = vcmask 130048
        %v313 = vsel %vm312, %v307, %v309
        %v314 = vsel %vm312, %v309, %v311
        %317 = vst [vmem:[#allocation3] sm:$0xf0] %v313
        %318 = vst [vmem:[#allocation3 + $0x8] sm:$0xf0] %v314
        %v319 = vld [vmem:[#allocation2] sm:$0xff]
        %v320 = vld [vmem:[#allocation2 + $0x8] sm:$0xf]
        %v321 = vsel %vm271, 1, 0
        %v322 = vsel %vm272, 1, 0
        %vm323 = vcmp.eq.s32.totalorder %v321, 1
        %vm324 = vcmp.eq.s32.totalorder %v322, 1
        %v327 = vcombine.high %v319, %v319
        %328 = vrot.lane.b32.xlu0 %v319, 15
        %v329 = vpop.permute.xlu0 %328
        %330 = vrot.lane.b32.xlu0 %v327, 15
        %v331 = vpop.permute.xlu0 %330
        %332 = vrot.lane.b32.xlu0 %v320, 15
        %v333 = vpop.permute.xlu0 %332
        %vm334 = vcmask 121856
        %v335 = vsel %vm334, %v329, %v331
        %v336 = vsel %vm334, %v331, %v333
        %v339 = vsel %vm323, %v335, 0.0
        %v340 = vsel %vm324, %v336, 0.0
        %341 = vst [vmem:[#allocation3 + $0x10] sm:$0xf] %v339
        %342 = vst [vmem:[#allocation3 + $0x18] sm:$0xf] %v340
        %v343 = vld [vmem:[#allocation2] sm:$0xff]
        %v344 = vld [vmem:[#allocation2 + $0x8] sm:$0xf]
        %v347 = vcombine.high %v343, %v343
        %348 = vrot.lane.b32.xlu0 %v343, 1
        %v349 = vpop.permute.xlu0 %348
        %350 = vrot.lane.b32.xlu0 %v347, 1
        %v351 = vpop.permute.xlu0 %350
        %352 = vrot.lane.b32.xlu0 %v344, 1
        %v353 = vpop.permute.xlu0 %352
        %vm354 = vcmask 7168
        %v355 = vsel %vm354, %v349, %v351
        %v356 = vsel %vm354, %v351, %v353
        %v359 = vsel %vm280, %v355, 0.0
        %v360 = vsel %vm281, %v356, 0.0
        %v363 = vrot.slane %v359, 4
        %v364 = vrot.slane %v360, 4
        %367 = vst [vmem:[#allocation3 + $0x10] sm:$0xf0] %v363
        %368 = vst [vmem:[#allocation3 + $0x18] sm:$0xf0] %v364
        %v369 = vld [vmem:[#allocation2 + $0x4] sm:$0xff]
        %v371 = vcombine.high %v369, %v369
        %373 = vst [vmem:[#allocation3 + $0x20] sm:$0xf] %v369
        %374 = vst [vmem:[#allocation3 + $0x28] sm:$0xf] %v371
        %v375 = vld [vmem:[#allocation2 + $0x4] sm:$0xff]
        %v376 = vld [vmem:[#allocation2 + $0xc] sm:$0xf]
        %v379 = vcombine.high %v375, %v375
        %380 = vrot.lane.b32.xlu0 %v375, 127
        %v381 = vpop.permute.xlu0 %380
        %382 = vrot.lane.b32.xlu0 %v379, 127
        %v383 = vpop.permute.xlu0 %382
        %384 = vrot.lane.b32.xlu0 %v376, 127
        %v385 = vpop.permute.xlu0 %384
        %vm386 = vcmask 1039360
        %v387 = vsel %vm386, %v381, %v383
        %v388 = vsel %vm386, %v383, %v385
        %v391 = vsel %vm323, %v387, 0.0
        %v392 = vsel %vm324, %v388, 0.0
        %v395 = vrot.slane %v391, 4
        %v396 = vrot.slane %v392, 4
        %399 = vst [vmem:[#allocation3 + $0x20] sm:$0xf0] %v395
        %400 = vst [vmem:[#allocation3 + $0x28] sm:$0xf0] %v396
        %v401 = vld [vmem:[#allocation2 + $0x4] sm:$0xff]
        %v402 = vld [vmem:[#allocation2 + $0xc] sm:$0xf]
        %v405 = vcombine.high %v401, %v401
        %406 = vrot.lane.b32.xlu0 %v401, 113
        %v407 = vpop.permute.xlu0 %406
        %408 = vrot.lane.b32.xlu0 %v405, 113
        %v409 = vpop.permute.xlu0 %408
        %410 = vrot.lane.b32.xlu0 %v402, 113
        %v411 = vpop.permute.xlu0 %410
        %vm412 = vcmask 924672
        %v413 = vsel %vm412, %v407, %v409
        %v414 = vsel %vm412, %v409, %v411
        %v417 = vsel %vm280, %v413, 0.0
        %v418 = vsel %vm281, %v414, 0.0
        %419 = vst [vmem:[#allocation3 + $0x30] sm:$0xf] %v417
        %420 = vst [vmem:[#allocation3 + $0x38] sm:$0xf] %v418
        %v421 = vld [vmem:[#allocation2 + $0x4] sm:$0xff]
        %v422 = vld [vmem:[#allocation2 + $0xc] sm:$0xf]
        %v425 = vcombine.low %v421, %v421
        %v426 = vcombine.low %v422, %v422
        %427 = vrot.lane.b32.xlu0 %v425, 112
        %v428 = vpop.permute.xlu0 %427
        %429 = vrot.lane.b32.xlu0 %v421, 112
        %v430 = vpop.permute.xlu0 %429
        %431 = vrot.lane.b32.xlu0 %v426, 112
        %v432 = vpop.permute.xlu0 %431
        %vm433 = vcmask 916480
        %v434 = vsel %vm433, %v428, %v430
        %v435 = vsel %vm433, %v430, %v432
        %438 = vst [vmem:[#allocation3 + $0x30] sm:$0xf0] %v434
        %439 = vst [vmem:[#allocation3 + $0x38] sm:$0xf0] %v435
        %v440 = vld [vmem:[#allocation2 + $0x4] sm:$0xff]
        %v441 = vld [vmem:[#allocation2 + $0xc] sm:$0xf]
        %v444 = vcombine.high %v440, %v440
        %445 = vrot.lane.b32.xlu0 %v440, 111
        %v446 = vpop.permute.xlu0 %445
        %447 = vrot.lane.b32.xlu0 %v444, 111
        %v448 = vpop.permute.xlu0 %447
        %449 = vrot.lane.b32.xlu0 %v441, 111
        %v450 = vpop.permute.xlu0 %449
        %vm451 = vcmask 908288
        %v452 = vsel %vm451, %v446, %v448
        %v453 = vsel %vm451, %v448, %v450
        %v456 = vsel %vm323, %v452, 0.0
        %v457 = vsel %vm324, %v453, 0.0
        %458 = vst [vmem:[#allocation3 + $0x40] sm:$0xf] %v456
        %459 = vst [vmem:[#allocation3 + $0x48] sm:$0xf] %v457
        %v460 = vld [vmem:[%s1] sm:$0xf]
        %v461 = vld [vmem:[#allocation3] sm:$0xff]
        %v462 = vld [vmem:[#allocation3 + $0x8] sm:$0xff]
        %v463 = vld [vmem:[#allocation3 + $0x10] sm:$0xff]
        %v464 = vld [vmem:[#allocation3 + $0x18] sm:$0xff]
        %v465 = vld [vmem:[#allocation3 + $0x20] sm:$0xff]
        %v466 = vld [vmem:[#allocation3 + $0x28] sm:$0xff]
        %v467 = vld [vmem:[#allocation3 + $0x30] sm:$0xff]
        %v468 = vld [vmem:[#allocation3 + $0x38] sm:$0xff]
        %v469 = vld [vmem:[#allocation3 + $0x40] sm:$0xf]
        %v470 = vld [vmem:[#allocation3 + $0x48] sm:$0xf]
        %v471 = vld [vmem:[%s2] sm:$0xf]
        %473 = vset.pattern.permute.xlu0 0
        %474 = vperm.xlu0 %473, %v471
        %v475 = vpop.permute.xlu0 %474
        %vm477 = vcmask 293888
        %v479 = vsel %vm477, %v460, 0
        %vm481 = vcmask 1043456
        %v483 = vsel %vm481, %v469, 0
        %v486 = vsel %vm481, %v470, 0
        %488 = vmatprep.subr.mxu0 0.0
        %489 = vmatpush1.msra.mxu0 0.0
        %490 = vmatprep.subr.mxu0 0.0
        %491 = vmatpush1.msra.mxu0 0.0
        %492 = vmatprep.subr.mxu0 0.0
        %493 = vmatpush1.msra.mxu0 0.0
        %494 = vmatprep.subr.mxu0 0.0
        %495 = vmatpush1.msra.mxu0 0.0
        %496 = vmatprep.subr.mxu0 0.0
        %497 = vmatpush1.msra.mxu0 0.0
        %498 = vmatprep.subr.mxu0 0.0
        %499 = vmatpush1.msra.mxu0 0.0
        %500 = vmatprep.subr.mxu0 0.0
        %501 = vmatpush1.msra.mxu0 0.0
        %502 = vmatprep.subr.mxu0 0.0
        %503 = vmatpush1.msra.mxu0 0.0
        %504 = vmatprep.subr.mxu0 0.0
        %505 = vmatpush1.msra.mxu0 0.0
        %506 = vmatprep.subr.mxu0 0.0
        %507 = vmatpush1.msra.mxu0 0.0
        %508 = vmatprep.subr.mxu0 0.0
        %509 = vmatpush1.msra.mxu0 0.0
        %510 = vmatprep.subr.mxu0 %v486
        %511 = vmatpush1.msra.mxu0 %v483
        %512 = vmatprep.subr.mxu0 %v468
        %513 = vmatpush1.msra.mxu0 %v467
        %514 = vmatprep.subr.mxu0 %v466
        %515 = vmatpush1.msra.mxu0 %v465
        %516 = vmatprep.subr.mxu0 %v464
        %517 = vmatpush1.msra.mxu0 %v463
        %518 = vmatprep.subr.mxu0 %v462
        %519 = vmatpush1.msra.mxu0 %v461
        %520 = vmatprep.subr.mxu0 0.0
        %521 = vmatpush2.msra.mxu0 0.0
        %522 = vmatprep.subr.mxu0 0.0
        %523 = vmatpush2.msra.mxu0 0.0
        %524 = vmatprep.subr.mxu0 0.0
        %525 = vmatpush2.msra.mxu0 0.0
        %526 = vmatprep.subr.mxu0 0.0
        %527 = vmatpush2.msra.mxu0 0.0
        %528 = vmatprep.subr.mxu0 0.0
        %529 = vmatpush2.msra.mxu0 0.0
        %530 = vmatprep.subr.mxu0 0.0
        %531 = vmatpush2.msra.mxu0 0.0
        %532 = vmatprep.subr.mxu0 0.0
        %533 = vmatpush2.msra.mxu0 0.0
        %534 = vmatprep.subr.mxu0 0.0
        %535 = vmatpush2.msra.mxu0 0.0
        %536 = vmatprep.subr.mxu0 0.0
        %537 = vmatpush2.msra.mxu0 0.0
        %538 = vmatprep.subr.mxu0 0.0
        %539 = vmatpush2.msra.mxu0 0.0
        %540 = vmatprep.subr.mxu0 0.0
        %541 = vmatpush2.msra.mxu0 0.0
        %542 = vmatprep.subr.mxu0 0.0
        %543 = vmatpush2.msra.mxu0 0.0
        %544 = vmatprep.subr.mxu0 0.0
        %545 = vmatpush2.msra.mxu0 0.0
        %546 = vmatprep.subr.mxu0 0.0
        %547 = vmatpush2.msra.mxu0 0.0
        %548 = vmatprep.subr.mxu0 0.0
        %549 = vmatpush2.msra.mxu0 0.0
        %550 = vmatprep.subr.mxu0 0.0
        %551 = vmatpush2.msra.mxu0 0.0
        %552 = vmatprep.mubr.f32.mxu0 0.0
        %553 = vmatmul.mubr.f32.gmra.mxu0 %v479
        %v554 = vpop.f32.mrf.mxu0
        %v555 = vadd.f32 %v475, %v554
        %v556 = vpop.f32.mrf.mxu0
        %v557 = vadd.f32 %v475, %v556
        %558 = vdwg.mxu0
        %v559 = vmax.f32 %v555, 0.0
        %v560 = vmax.f32 %v557, 0.0
        %v563 = vcombine.low %v559, %v560
        %565 = vst [vmem:[#allocation2 + $0x4] sm:$0xff] %v563
        %v566 = vld [vmem:[#allocation2] sm:$0xff]
        %v567 = vld [vmem:[#allocation2 + $0x8] sm:$0xf]
        %v570 = vcombine.high %v566, %v566
        %571 = vrot.lane.b32.xlu0 %v566, 17
        %v572 = vpop.permute.xlu0 %571
        %573 = vrot.lane.b32.xlu0 %v570, 17
        %v574 = vpop.permute.xlu0 %573
        %575 = vrot.lane.b32.xlu0 %v567, 17
        %v576 = vpop.permute.xlu0 %575
        %v577 = vsel %vm291, %v572, %v574
        %v578 = vsel %vm291, %v574, %v576
        %v581 = vsel %vm280, %v577, 0.0
        %v582 = vsel %vm281, %v578, 0.0
        %583 = vst [vmem:[#allocation3] sm:$0xf] %v581
        %584 = vst [vmem:[#allocation3 + $0x8] sm:$0xf] %v582
        %v585 = vld [vmem:[#allocation2] sm:$0xff]
        %v586 = vld [vmem:[#allocation2 + $0x8] sm:$0xf]
        %v589 = vcombine.low %v585, %v585
        %v590 = vcombine.low %v586, %v586
        %591 = vrot.lane.b32.xlu0 %v589, 16
        %v592 = vpop.permute.xlu0 %591
        %593 = vrot.lane.b32.xlu0 %v585, 16
        %v594 = vpop.permute.xlu0 %593
        %595 = vrot.lane.b32.xlu0 %v590, 16
        %v596 = vpop.permute.xlu0 %595
        %v597 = vsel %vm312, %v592, %v594
        %v598 = vsel %vm312, %v594, %v596
        %601 = vst [vmem:[#allocation3] sm:$0xf0] %v597
        %602 = vst [vmem:[#allocation3 + $0x8] sm:$0xf0] %v598
        %v603 = vld [vmem:[#allocation2] sm:$0xff]
        %v604 = vld [vmem:[#allocation2 + $0x8] sm:$0xf]
        %v607 = vcombine.high %v603, %v603
        %608 = vrot.lane.b32.xlu0 %v603, 15
        %v609 = vpop.permute.xlu0 %608
        %610 = vrot.lane.b32.xlu0 %v607, 15
        %v611 = vpop.permute.xlu0 %610
        %612 = vrot.lane.b32.xlu0 %v604, 15
        %v613 = vpop.permute.xlu0 %612
        %v614 = vsel %vm334, %v609, %v611
        %v615 = vsel %vm334, %v611, %v613
        %v618 = vsel %vm323, %v614, 0.0
        %v619 = vsel %vm324, %v615, 0.0
        %620 = vst [vmem:[#allocation3 + $0x10] sm:$0xf] %v618
        %621 = vst [vmem:[#allocation3 + $0x18] sm:$0xf] %v619
        %v622 = vld [vmem:[#allocation2] sm:$0xff]
        %v623 = vld [vmem:[#allocation2 + $0x8] sm:$0xf]
        %v626 = vcombine.high %v622, %v622
        %627 = vrot.lane.b32.xlu0 %v622, 1
        %v628 = vpop.permute.xlu0 %627
        %629 = vrot.lane.b32.xlu0 %v626, 1
        %v630 = vpop.permute.xlu0 %629
        %631 = vrot.lane.b32.xlu0 %v623, 1
        %v632 = vpop.permute.xlu0 %631
        %v633 = vsel %vm354, %v628, %v630
        %v634 = vsel %vm354, %v630, %v632
        %v637 = vsel %vm280, %v633, 0.0
        %v638 = vsel %vm281, %v634, 0.0
        %v641 = vrot.slane %v637, 4
        %v642 = vrot.slane %v638, 4
        %645 = vst [vmem:[#allocation3 + $0x10] sm:$0xf0] %v641
        %646 = vst [vmem:[#allocation3 + $0x18] sm:$0xf0] %v642
        %v647 = vld [vmem:[#allocation2 + $0x4] sm:$0xff]
        %v649 = vcombine.high %v647, %v647
        %651 = vst [vmem:[#allocation3 + $0x20] sm:$0xf] %v647
        %652 = vst [vmem:[#allocation3 + $0x28] sm:$0xf] %v649
        %v653 = vld [vmem:[#allocation2 + $0x4] sm:$0xff]
        %v654 = vld [vmem:[#allocation2 + $0xc] sm:$0xf]
        %v657 = vcombine.high %v653, %v653
        %658 = vrot.lane.b32.xlu0 %v653, 127
        %v659 = vpop.permute.xlu0 %658
        %660 = vrot.lane.b32.xlu0 %v657, 127
        %v661 = vpop.permute.xlu0 %660
        %662 = vrot.lane.b32.xlu0 %v654, 127
        %v663 = vpop.permute.xlu0 %662
        %v664 = vsel %vm386, %v659, %v661
        %v665 = vsel %vm386, %v661, %v663
        %v668 = vsel %vm323, %v664, 0.0
        %v669 = vsel %vm324, %v665, 0.0
        %v672 = vrot.slane %v668, 4
        %v673 = vrot.slane %v669, 4
        %676 = vst [vmem:[#allocation3 + $0x20] sm:$0xf0] %v672
        %677 = vst [vmem:[#allocation3 + $0x28] sm:$0xf0] %v673
        %v678 = vld [vmem:[#allocation2 + $0x4] sm:$0xff]
        %v679 = vld [vmem:[#allocation2 + $0xc] sm:$0xf]
        %v682 = vcombine.high %v678, %v678
        %683 = vrot.lane.b32.xlu0 %v678, 113
        %v684 = vpop.permute.xlu0 %683
        %685 = vrot.lane.b32.xlu0 %v682, 113
        %v686 = vpop.permute.xlu0 %685
        %687 = vrot.lane.b32.xlu0 %v679, 113
        %v688 = vpop.permute.xlu0 %687
        %v689 = vsel %vm412, %v684, %v686
        %v690 = vsel %vm412, %v686, %v688
        %v693 = vsel %vm280, %v689, 0.0
        %v694 = vsel %vm281, %v690, 0.0
        %695 = vst [vmem:[#allocation3 + $0x30] sm:$0xf] %v693
        %696 = vst [vmem:[#allocation3 + $0x38] sm:$0xf] %v694
        %v697 = vld [vmem:[#allocation2 + $0x4] sm:$0xff]
        %v698 = vld [vmem:[#allocation2 + $0xc] sm:$0xf]
        %v701 = vcombine.low %v697, %v697
        %v702 = vcombine.low %v698, %v698
        %703 = vrot.lane.b32.xlu0 %v701, 112
        %v704 = vpop.permute.xlu0 %703
        %705 = vrot.lane.b32.xlu0 %v697, 112
        %v706 = vpop.permute.xlu0 %705
        %707 = vrot.lane.b32.xlu0 %v702, 112
        %v708 = vpop.permute.xlu0 %707
        %v709 = vsel %vm433, %v704, %v706
        %v710 = vsel %vm433, %v706, %v708
        %713 = vst [vmem:[#allocation3 + $0x30] sm:$0xf0] %v709
        %714 = vst [vmem:[#allocation3 + $0x38] sm:$0xf0] %v710
        %v715 = vld [vmem:[#allocation2 + $0x4] sm:$0xff]
        %v716 = vld [vmem:[#allocation2 + $0xc] sm:$0xf]
        %v719 = vcombine.high %v715, %v715
        %720 = vrot.lane.b32.xlu0 %v715, 111
        %v721 = vpop.permute.xlu0 %720
        %722 = vrot.lane.b32.xlu0 %v719, 111
        %v723 = vpop.permute.xlu0 %722
        %724 = vrot.lane.b32.xlu0 %v716, 111
        %v725 = vpop.permute.xlu0 %724
        %v726 = vsel %vm451, %v721, %v723
        %v727 = vsel %vm451, %v723, %v725
        %v730 = vsel %vm323, %v726, 0.0
        %v731 = vsel %vm324, %v727, 0.0
        %732 = vst [vmem:[#allocation3 + $0x40] sm:$0xf] %v730
        %733 = vst [vmem:[#allocation3 + $0x48] sm:$0xf] %v731
        %v734 = vld [vmem:[%s3] sm:$0xf]
        %v735 = vld [vmem:[#allocation3] sm:$0xff]
        %v736 = vld [vmem:[#allocation3 + $0x8] sm:$0xff]
        %v737 = vld [vmem:[#allocation3 + $0x10] sm:$0xff]
        %v738 = vld [vmem:[#allocation3 + $0x18] sm:$0xff]
        %v739 = vld [vmem:[#allocation3 + $0x20] sm:$0xff]
        %v740 = vld [vmem:[#allocation3 + $0x28] sm:$0xff]
        %v741 = vld [vmem:[#allocation3 + $0x30] sm:$0xff]
        %v742 = vld [vmem:[#allocation3 + $0x38] sm:$0xff]
        %v743 = vld [vmem:[#allocation3 + $0x40] sm:$0xf]
        %v744 = vld [vmem:[#allocation3 + $0x48] sm:$0xf]
        %v745 = vld [vmem:[%s4] sm:$0xf]
        %747 = vset.pattern.permute.xlu0 0
        %748 = vperm.xlu0 %747, %v745
        %v749 = vpop.permute.xlu0 %748
        %v752 = vsel %vm477, %v734, 0
        %v755 = vsel %vm481, %v743, 0
        %v758 = vsel %vm481, %v744, 0
        %760 = vmatprep.subr.mxu0 0.0
        %761 = vmatpush1.msra.mxu0 0.0
        %762 = vmatprep.subr.mxu0 0.0
        %763 = vmatpush1.msra.mxu0 0.0
        %764 = vmatprep.subr.mxu0 0.0
        %765 = vmatpush1.msra.mxu0 0.0
        %766 = vmatprep.subr.mxu0 0.0
        %767 = vmatpush1.msra.mxu0 0.0
        %768 = vmatprep.subr.mxu0 0.0
        %769 = vmatpush1.msra.mxu0 0.0
        %770 = vmatprep.subr.mxu0 0.0
        %771 = vmatpush1.msra.mxu0 0.0
        %772 = vmatprep.subr.mxu0 0.0
        %773 = vmatpush1.msra.mxu0 0.0
        %774 = vmatprep.subr.mxu0 0.0
        %775 = vmatpush1.msra.mxu0 0.0
        %776 = vmatprep.subr.mxu0 0.0
        %777 = vmatpush1.msra.mxu0 0.0
        %778 = vmatprep.subr.mxu0 0.0
        %779 = vmatpush1.msra.mxu0 0.0
        %780 = vmatprep.subr.mxu0 0.0
        %781 = vmatpush1.msra.mxu0 0.0
        %782 = vmatprep.subr.mxu0 %v758
        %783 = vmatpush1.msra.mxu0 %v755
        %784 = vmatprep.subr.mxu0 %v742
        %785 = vmatpush1.msra.mxu0 %v741
        %786 = vmatprep.subr.mxu0 %v740
        %787 = vmatpush1.msra.mxu0 %v739
        %788 = vmatprep.subr.mxu0 %v738
        %789 = vmatpush1.msra.mxu0 %v737
        %790 = vmatprep.subr.mxu0 %v736
        %791 = vmatpush1.msra.mxu0 %v735
        %792 = vmatprep.subr.mxu0 0.0
        %793 = vmatpush2.msra.mxu0 0.0
        %794 = vmatprep.subr.mxu0 0.0
        %795 = vmatpush2.msra.mxu0 0.0
        %796 = vmatprep.subr.mxu0 0.0
        %797 = vmatpush2.msra.mxu0 0.0
        %798 = vmatprep.subr.mxu0 0.0
        %799 = vmatpush2.msra.mxu0 0.0
        %800 = vmatprep.subr.mxu0 0.0
        %801 = vmatpush2.msra.mxu0 0.0
        %802 = vmatprep.subr.mxu0 0.0
        %803 = vmatpush2.msra.mxu0 0.0
        %804 = vmatprep.subr.mxu0 0.0
        %805 = vmatpush2.msra.mxu0 0.0
        %806 = vmatprep.subr.mxu0 0.0
        %807 = vmatpush2.msra.mxu0 0.0
        %808 = vmatprep.subr.mxu0 0.0
        %809 = vmatpush2.msra.mxu0 0.0
        %810 = vmatprep.subr.mxu0 0.0
        %811 = vmatpush2.msra.mxu0 0.0
        %812 = vmatprep.subr.mxu0 0.0
        %813 = vmatpush2.msra.mxu0 0.0
        %814 = vmatprep.subr.mxu0 0.0
        %815 = vmatpush2.msra.mxu0 0.0
        %816 = vmatprep.subr.mxu0 0.0
        %817 = vmatpush2.msra.mxu0 0.0
        %818 = vmatprep.subr.mxu0 0.0
        %819 = vmatpush2.msra.mxu0 0.0
        %820 = vmatprep.subr.mxu0 0.0
        %821 = vmatpush2.msra.mxu0 0.0
        %822 = vmatprep.subr.mxu0 0.0
        %823 = vmatpush2.msra.mxu0 0.0
        %824 = vmatprep.mubr.f32.mxu0 0.0
        %825 = vmatmul.mubr.f32.gmra.mxu0 %v752
        %v826 = vpop.f32.mrf.mxu0
        %v827 = vadd.f32 %v749, %v826
        %v828 = vpop.f32.mrf.mxu0
        %v829 = vadd.f32 %v749, %v828
        %830 = vdwg.mxu0
        %v832 = vcombine.high %v241, %v241
        %v834 = vadd.f32 %v827, %v241
        %v835 = vadd.f32 %v829, %v832
        %v836 = vmax.f32 %v834, 0.0
        %v837 = vmax.f32 %v835, 0.0
        %v840 = vcombine.low %v836, %v837
        %842 = vst [vmem:[%s240] sm:$0xff] %v840
        %s843 = sand.u32 %s140, 1
        %s844 = scalar_lea.sflag [#allocation6], %s843
        %s845 = sand.u32 %s140, 1
        %s846 = smul.addr %s845, 8
        %s847 = scalar_lea.vmem [#allocation7], %s846
        // Predicated region
        $region45: #{tpu_custom_call.1} parent=39 // pred_check
          %p848 = pneg %p150
        $region46: #{tpu_custom_call.1} parent=39 // pred_check_branch
          %850 = sbr.rel (%p848) target = $region48
        $region47: #{tpu_custom_call.1} parent=39 // pred_region
          %s852 = ssub.s32 128, 128
          %853 = vsyncadd %s844, %s852
          %s854 = smul.addr %s22, 2
          %s855 = smul.addr %s854, 64
          %s856 = scalar_lea.hbm %s5, %s855
          %s858 = sshll.u32 %s847, 4
          %s859 = int_to_ptr.vmem [resolvable:$true] %s858
          %861 = dma.vmem_to_hbm [thread:$0]  %s859, 128, %s856, %s844
        $region48: #{tpu_custom_call.1} parent=39 // pred_fallthru
          _
      $region40: #{tpu_custom_call.1} parent=5 // pred_fallthru
        _
      %p862 = scmp.le.s32.totalorder 2, %s17
      // Predicated region
      $region49: #{tpu_custom_call.1} parent=5 // pred_check
        %p863 = pneg %p862
      $region50: #{tpu_custom_call.1} parent=5 // pred_check_branch
        %865 = sbr.rel (%p863) target = $region52
      $region51: #{tpu_custom_call.1} parent=5 // pred_region
        %s866 = ssub.s32 %s17, 2
        // Predicated region
        $region53: #{tpu_custom_call.1} parent=51 // pred_check
          %p867 = pneg %p156
        $region54: #{tpu_custom_call.1} parent=51 // pred_check_branch
          %869 = sbr.rel (%p867) target = $region56
        $region55: #{tpu_custom_call.1} parent=51 // pred_region
          %s870 = sand.u32 %s141, 1
          %s871 = scalar_lea.sflag [#allocation6], %s870
          %s872 = sand.u32 %s141, 1
          %s873 = smul.addr %s872, 8
          %s874 = scalar_lea.vmem [#allocation7], %s873
          %875 = dma.done %s871, 128
        $region56: #{tpu_custom_call.1} parent=51 // pred_fallthru
          _
      $region52: #{tpu_custom_call.1} parent=5 // pred_fallthru
        _
    $region6: #{tpu_custom_call.1} parent=1 // loop_footer
      %s21 = sadd.s32 1, %s17
    $region7: #{tpu_custom_call.1} parent=1 // loop_footer_branch
      %16 = sbr.rel target = $region3
    $region8: #{tpu_custom_call.1} parent=1 // loop_exit
      _
    %876 = vsyncpa [#allocation5], 1
    %s877 = scalar_lea.sflag [#allocation5], 1
    %878 = vsyncpa %s877, 1
    %879 = vsyncpa [#allocation6], 1
    %s880 = scalar_lea.sflag [#allocation6], 1
    %881 = vsyncpa %s880, 1

</llo_original>
